<compile_context>
chip_gen: v7x
topology: tpu7x:2x2x1
jax: 0.10.0
libtpu: 0.0.40
codegen_flags: <defaults>
</compile_context>

<pallas_src>
import functools
from math import sqrt

import jax
import jax.numpy as jnp
from jax import lax
from jax.experimental import pallas as pl
from jax.experimental.pallas import tpu as pltpu


def _classifier_kernel(x_ref, w_ref, w2_ref, o_ref, *,
                       alpha, k_valid, use_bf16_matmul):
    """One grid step == one tile of batch rows."""
    x = x_ref[...]                                     # (Tb, D)     f32
    w = w_ref[...]                                     # (K_pad, D)  f32
    w2 = w2_ref[...]                                   # (1, K_pad)  f32 (hoisted)

    # Pairwise squared distances via a single MXU contraction:
    #   ||x - w||^2 = ||x||^2 + ||w||^2 - 2 x.w
    if use_bf16_matmul:
        xw = lax.dot_general(x.astype(jnp.bfloat16), w.astype(jnp.bfloat16),
                             (((1,), (1,)), ((), ())),
                             preferred_element_type=jnp.float32)      # (Tb, K_pad)
    else:
        xw = lax.dot_general(x, w, (((1,), (1,)), ((), ())),
                             preferred_element_type=jnp.float32)      # (Tb, K_pad)
    x2 = jnp.sum(x * x, axis=-1, keepdims=True)                       # (Tb, 1)
    dist2 = jnp.maximum(x2 + w2 - 2.0 * xw, 0.0)                      # (Tb, K_pad)

    # q = (1 + d^2/alpha)^(-(alpha+1)/2)   -- exponent is static (alpha static)
    exponent = (alpha + 1.0) / 2.0
    inv_alpha = 1.0 / alpha
    base = 1.0 + dist2 * inv_alpha
    if float(exponent).is_integer() and 1.0 <= exponent <= 4.0:
        # One EUP reciprocal + (n-1) VPU multiplies.
        n = int(exponent)
        r = pl.reciprocal(base, approx=False)
        q = r
        for _ in range(n - 1):
            q = q * r
    else:
        # One log1p + one exp on the EUP (drops the reciprocal).
        q = jnp.exp(-exponent * jnp.log1p(dist2 * inv_alpha))

    # Zero the lane-padding columns so they don't pollute the normalizer.
    k_pad = q.shape[1]
    if k_valid != k_pad:
        col = lax.broadcasted_iota(jnp.int32, q.shape, 1)
        q = jnp.where(col < k_valid, q, 0.0)

    denom = jnp.sum(q, axis=-1, keepdims=True)                        # (Tb, 1)
    o_ref[...] = q * pl.reciprocal(denom, approx=False)


def _pick_block_rows(batch, d, k_pad, *, cap=512, vmem_budget=28 << 20):
    """Largest 8-aligned row tile <= cap fitting a conservative VMEM budget.

    Budget: resident weights (K_pad*D) + w2 (K_pad) + double-buffered x tile
    (2*rows*D) + double-buffered out tile (2*rows*K_pad), all f32.
    """
    b8 = -(-batch // 8) * 8                       # batch rounded up to 8
    rows = min(cap, b8)

    fixed = (k_pad * d + k_pad) * 4
    per_row = 2 * (d + k_pad) * 4
    if fixed < vmem_budget:
        fit = (vmem_budget - fixed) // per_row
        rows = min(rows, max(8, (fit // 8) * 8))
    else:
        # TODO(synk): tile K/D when the resident weight matrix alone exceeds VMEM.
        rows = 8

    # Keep >= 2 grid steps when the batch allows (feeds both v7x TensorCores,
    # enables pipelining).
    if b8 >= 16:
        rows = min(rows, max(8, ((b8 // 2) // 8) * 8))

    return max(8, (rows // 8) * 8)


def classifier_layer(inputs, weight, *, alpha, block_rows=None,
                     use_bf16_matmul=False):
    """Pallas-backed forward pass of ClassifierLayer.

    inputs: (B, d_model) float32
    weight: (k, d_model) float32 (cluster centroids)
    returns: (B, k) row-normalized soft assignments.
    """
    B, D = inputs.shape
    K, D2 = weight.shape
    assert D == D2, "feature dims must match"

    inputs = inputs.astype(jnp.float32)
    weight = weight.astype(jnp.float32)

    # ---- lane-dense K: pad to a multiple of 128 (padded cols masked in-kernel)
    K_pad = -(-K // 128) * 128
    if K_pad != K:
        weight_p = jnp.zeros((K_pad, D), jnp.float32).at[:K].set(weight)
    else:
        weight_p = weight

    # ---- hoisted ||w||^2 (computed once, grid-invariant input)
    w2 = jnp.sum(weight_p * weight_p, axis=-1)[None, :]               # (1, K_pad)

    # ---- row tiling with cdiv + batch padding (no whole-batch fallback)
    if block_rows is None:
        block_rows = _pick_block_rows(B, D, K_pad)
    block_rows = max(8, (block_rows // 8) * 8)
    grid_b = pl.cdiv(B, block_rows)
    B_pad = grid_b * block_rows
    if B_pad != B:
        inputs_p = jnp.zeros((B_pad, D), jnp.float32).at[:B].set(inputs)
    else:
        inputs_p = inputs

    kernel = functools.partial(_classifier_kernel, alpha=float(alpha),
                               k_valid=K, use_bf16_matmul=use_bf16_matmul)

    out = pl.pallas_call(
        kernel,
        out_shape=jax.ShapeDtypeStruct((B_pad, K_pad), jnp.float32),
        grid_spec=pltpu.PrefetchScalarGridSpec(
            num_scalar_prefetch=0,
            grid=(grid_b,),
            in_specs=[
                pl.BlockSpec((block_rows, D), lambda i: (i, 0)),   # batch row tile
                pl.BlockSpec((K_pad, D), lambda i: (0, 0)),        # resident weights
                pl.BlockSpec((1, K_pad), lambda i: (0, 0)),        # resident ||w||^2
            ],
            out_specs=pl.BlockSpec((block_rows, K_pad), lambda i: (i, 0)),
        ),
        compiler_params=pltpu.CompilerParams(
            dimension_semantics=("parallel",)),
    )(inputs_p, weight_p, w2)

    return out[:B, :K]


def _reference(inputs, weight, alpha):
    """Plain-JAX reference mirroring the PyTorch forward exactly."""
    x = inputs[:, None, :] - weight[None, :, :]       # (B, k, d_model)
    x = jnp.sum(x * x, axis=2)                        # (B, k)
    x = 1.0 + x / alpha
    x = 1.0 / x
    x = x ** ((alpha + 1.0) / 2.0)
    return x / jnp.sum(x, axis=1, keepdims=True)


if __name__ == "__main__":
    # Small deterministic config consistent with the module's forward.
    B, d_model, k = 16, 32, 16
    alpha = 3.0

    key = jax.random.PRNGKey(0)
    k_in, k_w = jax.random.split(key)

    # Xavier-uniform init for the (k, d_model) centroid matrix
    # (matches nn.init.xavier_uniform_).
    bound = sqrt(6.0 / (k + d_model))
    weight = jax.random.uniform(k_w, (k, d_model), jnp.float32, -bound, bound)
    inputs = jax.random.normal(k_in, (B, d_model), jnp.float32)

    out = classifier_layer(inputs, weight, alpha=alpha)
    out = jax.block_until_ready(out)

    ref = _reference(inputs, weight, alpha)
    assert out.shape == (B, k)
    assert jnp.allclose(out, ref, atol=1e-4, rtol=1e-4), "mismatch vs reference"
    assert jnp.allclose(jnp.sum(out, axis=1), 1.0, atol=1e-5), "rows must sum to 1"

    print("KERNEL_OK")
</pallas_src>

<mosaic_0001>
module attributes {stable_mosaic.version = 11 : i64} {
  func.func @_classifier_kernel(%arg0: i32, %arg1: memref<8x32xf32, #tpu.memory_space<vmem>>, %arg2: memref<128x32xf32, #tpu.memory_space<vmem>>, %arg3: memref<1x128xf32, #tpu.memory_space<vmem>>, %arg4: memref<8x128xf32, #tpu.memory_space<vmem>>) attributes {dimension_semantics = [#tpu.dimension_semantics<parallel>], iteration_bounds = array<i64: 2>, scalar_prefetch = 0 : i64, scratch_operands = 0 : i64, tpu.core_type = #tpu.core_type<tc>, window_params = [{transform_indices = @transform_0, window_bounds = array<i64: 8, 32>}, {pipeline_mode = #tpu.pipeline_mode<synchronous>, transform_indices = @transform_1, window_bounds = array<i64: 128, 32>}, {pipeline_mode = #tpu.pipeline_mode<synchronous>, transform_indices = @transform_2, window_bounds = array<i64: 1, 128>}, {transform_indices = @transform_3, window_bounds = array<i64: 8, 128>}]} {
    %c0 = arith.constant 0 : index
    %c0_0 = arith.constant 0 : index
    %0 = vector.load %arg1[%c0, %c0_0] : memref<8x32xf32, #tpu.memory_space<vmem>>, vector<8x32xf32>
    %c0_1 = arith.constant 0 : index
    %c0_2 = arith.constant 0 : index
    %1 = vector.load %arg2[%c0_1, %c0_2] : memref<128x32xf32, #tpu.memory_space<vmem>>, vector<128x32xf32>
    %c0_3 = arith.constant 0 : index
    %c0_4 = arith.constant 0 : index
    %2 = vector.load %arg3[%c0_3, %c0_4] : memref<1x128xf32, #tpu.memory_space<vmem>>, vector<1x128xf32>
    %cst = arith.constant dense<0.000000e+00> : vector<8x128xf32>
    %3 = tpu.matmul %0, %1, %cst {dimension_numbers = #tpu.dot_dimension_numbers<[1], [1], [0], [0], [0, 0, 1, 0], [], []>} : vector<8x32xf32>, vector<128x32xf32>, vector<8x128xf32> -> vector<8x128xf32>
    %4 = arith.mulf %0, %0 : vector<8x32xf32>
    %cst_5 = arith.constant dense<0.000000e+00> : vector<8xf32>
    %5 = vector.multi_reduction <add>, %4, %cst_5 [1] : vector<8x32xf32> to vector<8xf32>
    %6 = vector.shape_cast %5 : vector<8xf32> to vector<8x1xf32>
    %7 = vector.broadcast %6 : vector<8x1xf32> to vector<8x128xf32>
    %8 = vector.broadcast %2 : vector<1x128xf32> to vector<8x128xf32>
    %9 = arith.addf %7, %8 : vector<8x128xf32>
    %cst_6 = arith.constant 2.000000e+00 : f32
    %10 = vector.broadcast %cst_6 : f32 to vector<8x128xf32>
    %11 = arith.mulf %10, %3 : vector<8x128xf32>
    %12 = arith.subf %9, %11 : vector<8x128xf32>
    %cst_7 = arith.constant 0.000000e+00 : f32
    %13 = vector.broadcast %cst_7 : f32 to vector<8x128xf32>
    %14 = arith.maximumf %12, %13 : vector<8x128xf32>
    %cst_8 = arith.constant 0.333333343 : f32
    %15 = vector.broadcast %cst_8 : f32 to vector<8x128xf32>
    %16 = arith.mulf %14, %15 : vector<8x128xf32>
    %cst_9 = arith.constant 1.000000e+00 : f32
    %17 = vector.broadcast %cst_9 : f32 to vector<8x128xf32>
    %18 = arith.addf %17, %16 : vector<8x128xf32>
    %19 = tpu.reciprocal %18 : vector<8x128xf32> -> vector<8x128xf32>
    %20 = arith.mulf %19, %19 : vector<8x128xf32>
    %21 = tpu.iota {dimensions = array<i32: 1>} : vector<8x128xi32>
    %c16_i32 = arith.constant 16 : i32
    %22 = vector.broadcast %c16_i32 : i32 to vector<8x128xi32>
    %23 = arith.cmpi slt, %21, %22 : vector<8x128xi32>
    %cst_10 = arith.constant 0.000000e+00 : f32
    %24 = vector.broadcast %cst_10 : f32 to vector<8x128xf32>
    %25 = arith.select %23, %20, %24 : vector<8x128xi1>, vector<8x128xf32>
    %cst_11 = arith.constant dense<0.000000e+00> : vector<8xf32>
    %26 = vector.multi_reduction <add>, %25, %cst_11 [1] : vector<8x128xf32> to vector<8xf32>
    %27 = vector.shape_cast %26 : vector<8xf32> to vector<8x1xf32>
    %28 = tpu.reciprocal %27 : vector<8x1xf32> -> vector<8x1xf32>
    %29 = vector.broadcast %28 : vector<8x1xf32> to vector<8x128xf32>
    %30 = arith.mulf %25, %29 : vector<8x128xf32>
    %c0_12 = arith.constant 0 : index
    %c0_13 = arith.constant 0 : index
    %31 = vector.load %arg4[%c0_12, %c0_13] : memref<8x128xf32, #tpu.memory_space<vmem>>, vector<8x128xf32>
    tpu.vector_store %arg4[%c0_12, %c0_13], %30 {strides = array<i32>} : memref<8x128xf32, #tpu.memory_space<vmem>>, vector<8x128xf32>,
    return
  }
  func.func @transform_0(%arg0: i32) -> (i32, i32) {
    %c0_i32 = arith.constant 0 : i32
    %c0_i32_0 = arith.constant 0 : i32
    return %arg0, %c0_i32 : i32, i32
  }
  func.func @transform_1(%arg0: i32) -> (i32, i32) {
    %c0_i32 = arith.constant 0 : i32
    %c0_i32_0 = arith.constant 0 : i32
    %c0_i32_1 = arith.constant 0 : i32
    return %c0_i32, %c0_i32_0 : i32, i32
  }
  func.func @transform_2(%arg0: i32) -> (i32, i32) {
    %c0_i32 = arith.constant 0 : i32
    %c0_i32_0 = arith.constant 0 : i32
    %c0_i32_1 = arith.constant 0 : i32
    return %c0_i32, %c0_i32_0 : i32, i32
  }
  func.func @transform_3(%arg0: i32) -> (i32, i32) {
    %c0_i32 = arith.constant 0 : i32
    %c0_i32_0 = arith.constant 0 : i32
    return %arg0, %c0_i32 : i32, i32
  }
}

</mosaic_0001>

<llo_original>
// kernel: tpu_custom_call.1
$region0: #{tpu_custom_call.1}
  #allocation0 [shape = 'u32[]', space=smem, size = 0x4, offset = 0x4, fixed_abs, tag = 'smem constant byte address 0x4 - core index']
  #allocation1 [shape = 'u32[144,128]{1,0:T(1,128)}', space=vmem, size = 0x12000, scoped, tag = 'internal scratch']
  %s0 = inlined_call_operand.vmem [shape: f32[16,32], index: 0, kind: input, shape index: {}]
  %s1 = inlined_call_operand.vmem [shape: f32[128,32], index: 1, kind: input, shape index: {}]
  %s2 = inlined_call_operand.vmem [shape: f32[1,128], index: 2, kind: input, shape index: {}]
  %s3 = inlined_call_operand.hbm [shape: f32[16,128], index: 3, kind: output, shape index: {}]
  %s4 = sld [smem:[#allocation0]]
  $region45: #{tpu_custom_call.1} parent=0
    _
  %s6 = ssub.s32 1, %s4
  %s7 = scalar_select 0, %s6, %s4
  $region1: #{tpu_custom_call.1} parent=0
    #allocation2 [shape = 'u8[8192]{0}', space=vmem, size = 0x2000, scoped, tag = 'output window, operand 0']
    #allocation3 [shape = 's32[2]{0}', space=sflag, size = 0x8, scoped, tag = 'scoped memory for tpu_custom_call.1']
    %8 = vsyncpa [#allocation3], 0
    %s9 = scalar_lea.sflag [#allocation3], 1
    %10 = vsyncpa %s9, 0
    loop: start=0, step=1, limit=4
    $region2: #{tpu_custom_call.1} parent=1 // loop_pre_header
      _
    $region3: #{tpu_custom_call.1} parent=1 // loop_header
      %s12 = sphi 0, %s16
      %p13 = scmp.ge.s32.totalorder %s12, 4
      %s22 = sphi 0, %s24
      %s25 = sphi 0, %s22
      %s26 = sphi 0, %s25
      %s42 = sphi 0, %s26
      %s46 = sphi 0, %s46
      %s48 = sphi 0, %s46
      %s49 = sphi 0, %s48
      %s63 = sphi 0, %s49
      %s67 = sphi 0, %s67
      %s69 = sphi 0, %s67
      %s70 = sphi 0, %s69
      %s84 = sphi 0, %s70
      %s90 = sphi 0, %s92
      %s93 = sphi 0, %s90
      %s94 = sphi 0, %s93
      %s110 = sphi 0, %s94
    $region4: #{tpu_custom_call.1} parent=1 // loop_header_branch
      %15 = sbr.rel (%p13) target = $region8
    $region5: #{tpu_custom_call.1} parent=1 // loop_body
      %s17 = ssub.s32 %s12, 1
      %s18 = ssub.s32 %s12, 2
      %s19 = sadd.s32 %s12, 1
      %s20 = ssub.s32 %s12, %s19
      %p21 = scmp.eq.s32.totalorder %s20, 0
      %s23 = sadd.s32 %s22, 1
      %s24 = scalar_select %p21, %s22, %s23
      %p27 = pneg %p21
      %p28 = scmp.eq.s32.totalorder %s12, 1
      %p29 = por %p27, %p28
      %p30 = scmp.ne.s32.totalorder %s22, %s25
      %p31 = scmp.eq.s32.totalorder %s12, 0
      %p32 = por %p30, %p31
      %p33 = scmp.ne.s32.totalorder %s22, %s25
      %p34 = scmp.eq.s32.totalorder %s17, 1
      %p35 = por %p33, %p34
      %p36 = scmp.ne.s32.totalorder %s25, %s26
      %p37 = scmp.eq.s32.totalorder %s17, 0
      %p38 = por %p36, %p37
      %p39 = scmp.ne.s32.totalorder %s25, %s26
      %p40 = scmp.eq.s32.totalorder %s18, 1
      %p41 = por %p39, %p40
      %p43 = scmp.ne.s32.totalorder %s26, %s42
      %p44 = scmp.eq.s32.totalorder %s18, 0
      %p45 = por %p43, %p44
      %s47 = sadd.s32 %s46, 1
      %p50 = scmp.eq.s32.totalorder %s12, 1
      %p51 = scmp.ne.s32.totalorder %s46, %s48
      %p52 = scmp.eq.s32.totalorder %s12, 0
      %p53 = por %p51, %p52
      %p54 = scmp.ne.s32.totalorder %s46, %s48
      %p55 = scmp.eq.s32.totalorder %s17, 1
      %p56 = por %p54, %p55
      %p57 = scmp.ne.s32.totalorder %s48, %s49
      %p58 = scmp.eq.s32.totalorder %s17, 0
      %p59 = por %p57, %p58
      %p60 = scmp.ne.s32.totalorder %s48, %s49
      %p61 = scmp.eq.s32.totalorder %s18, 1
      %p62 = por %p60, %p61
      %p64 = scmp.ne.s32.totalorder %s49, %s63
      %p65 = scmp.eq.s32.totalorder %s18, 0
      %p66 = por %p64, %p65
      %s68 = sadd.s32 %s67, 1
      %p71 = scmp.eq.s32.totalorder %s12, 1
      %p72 = scmp.ne.s32.totalorder %s67, %s69
      %p73 = scmp.eq.s32.totalorder %s12, 0
      %p74 = por %p72, %p73
      %p75 = scmp.ne.s32.totalorder %s67, %s69
      %p76 = scmp.eq.s32.totalorder %s17, 1
      %p77 = por %p75, %p76
      %p78 = scmp.ne.s32.totalorder %s69, %s70
      %p79 = scmp.eq.s32.totalorder %s17, 0
      %p80 = por %p78, %p79
      %p81 = scmp.ne.s32.totalorder %s69, %s70
      %p82 = scmp.eq.s32.totalorder %s18, 1
      %p83 = por %p81, %p82
      %p85 = scmp.ne.s32.totalorder %s70, %s84
      %p86 = scmp.eq.s32.totalorder %s18, 0
      %p87 = por %p85, %p86
      %s88 = ssub.s32 %s12, %s19
      %p89 = scmp.eq.s32.totalorder %s88, 0
      %s91 = sadd.s32 %s90, 1
      %s92 = scalar_select %p89, %s90, %s91
      %p95 = pneg %p89
      %p96 = scmp.eq.s32.totalorder %s12, 1
      %p97 = por %p95, %p96
      %p98 = scmp.ne.s32.totalorder %s90, %s93
      %p99 = scmp.eq.s32.totalorder %s12, 0
      %p100 = por %p98, %p99
      %p101 = scmp.ne.s32.totalorder %s90, %s93
      %p102 = scmp.eq.s32.totalorder %s17, 1
      %p103 = por %p101, %p102
      %p104 = scmp.ne.s32.totalorder %s93, %s94
      %p105 = scmp.eq.s32.totalorder %s17, 0
      %p106 = por %p104, %p105
      %p107 = scmp.ne.s32.totalorder %s93, %s94
      %p108 = scmp.eq.s32.totalorder %s18, 1
      %p109 = por %p107, %p108
      %p111 = scmp.ne.s32.totalorder %s94, %s110
      %p112 = scmp.eq.s32.totalorder %s18, 0
      %p113 = por %p111, %p112
      %p114 = scmp.le.s32.totalorder 1, %s12
      %p115 = scmp.lt.s32.totalorder %s12, 3
      %p116 = pnand %p114, %p115
      %p117 = pneg %p116
      // Predicated region
      $region9: #{tpu_custom_call.1} parent=5 // pred_check
        _
      $region10: #{tpu_custom_call.1} parent=5 // pred_check_branch
        %119 = sbr.rel (%p116) target = $region12
      $region11: #{tpu_custom_call.1} parent=5 // pred_region
        %s120 = ssub.s32 %s12, 1
        // Predicated region
        $region13: #{tpu_custom_call.1} parent=11 // pred_check
          %p121 = pneg %p59
        $region14: #{tpu_custom_call.1} parent=11 // pred_check_branch
          %123 = sbr.rel (%p121) target = $region16
        $region15: #{tpu_custom_call.1} parent=11 // pred_region
          _
        $region16: #{tpu_custom_call.1} parent=11 // pred_fallthru
          _
        // Predicated region
        $region17: #{tpu_custom_call.1} parent=11 // pred_check
          %p124 = pneg %p80
        $region18: #{tpu_custom_call.1} parent=11 // pred_check_branch
          %126 = sbr.rel (%p124) target = $region20
        $region19: #{tpu_custom_call.1} parent=11 // pred_region
          _
        $region20: #{tpu_custom_call.1} parent=11 // pred_fallthru
          _
      $region12: #{tpu_custom_call.1} parent=5 // pred_fallthru
        _
      %p127 = scmp.lt.s32.totalorder %s12, 2
      // Predicated region
      $region21: #{tpu_custom_call.1} parent=5 // pred_check
        %p128 = pneg %p127
      $region22: #{tpu_custom_call.1} parent=5 // pred_check_branch
        %130 = sbr.rel (%p128) target = $region24
      $region23: #{tpu_custom_call.1} parent=5 // pred_region
        // Predicated region
        $region25: #{tpu_custom_call.1} parent=23 // pred_check
          %p131 = pneg %p32
        $region26: #{tpu_custom_call.1} parent=23 // pred_check_branch
          %133 = sbr.rel (%p131) target = $region28
        $region27: #{tpu_custom_call.1} parent=23 // pred_region
          %p134 = scmp.lt.s32.totalorder %s12, 1
          %s135 = scalar_select %p134, %s12, 1
          %s136 = smul.addr %s135, 8
          %s137 = scalar_lea.vmem %s0, %s136
        $region28: #{tpu_custom_call.1} parent=23 // pred_fallthru
          _
      $region24: #{tpu_custom_call.1} parent=5 // pred_fallthru
        _
      %p138 = scmp.le.s32.totalorder 1, %s12
      %p139 = scmp.lt.s32.totalorder %s12, 3
      %p140 = pnand %p138, %p139
      %p141 = pneg %p140
      // Predicated region
      $region29: #{tpu_custom_call.1} parent=5 // pred_check
        _
      $region30: #{tpu_custom_call.1} parent=5 // pred_check_branch
        %143 = sbr.rel (%p140) target = $region32
      $region31: #{tpu_custom_call.1} parent=5 // pred_region
        %s144 = ssub.s32 %s12, 1
        %p145 = scmp.lt.s32.totalorder %s17, 1
        %s146 = scalar_select %p145, %s17, 1
        %s147 = smul.addr %s146, 8
        %s148 = scalar_lea.vmem %s0, %s147
        %p149 = pneg %p38
        %p150 = pneg %p35
        %p151 = pneg %p59
        %p152 = pneg %p56
        %p153 = pneg %p80
        %p154 = pneg %p77
        %p155 = pneg %p106
        %p156 = pneg %p103
        %s157 = sand.u32 %s93, 1
        %s158 = scalar_lea.sflag [#allocation3], %s157
        %s159 = sand.u32 %s93, 1
        %s160 = smul.addr %s159, 8
        %s161 = scalar_lea.vmem [#allocation2], %s160
        %p162 = scmp.lt.s32.totalorder %s17, 1
        %s163 = scalar_select %p162, %s17, 1
        %s164 = smul.addr %s163, 8
        %s165 = scalar_lea.vmem %s0, %s164
        %v166 = vld [vmem:[%s165] sm:$0xff]
        %v167 = vld [vmem:[%s1] sm:$0xff]
        %v168 = vld [vmem:[%s1 + $0x8] sm:$0xff]
        %v169 = vld [vmem:[%s1 + $0x10] sm:$0xff]
        %v170 = vld [vmem:[%s1 + $0x18] sm:$0xff]
        %v171 = vld [vmem:[%s1 + $0x20] sm:$0xff]
        %v172 = vld [vmem:[%s1 + $0x28] sm:$0xff]
        %v173 = vld [vmem:[%s1 + $0x30] sm:$0xff]
        %v174 = vld [vmem:[%s1 + $0x38] sm:$0xff]
        %v175 = vld [vmem:[%s1 + $0x40] sm:$0xff]
        %v176 = vld [vmem:[%s1 + $0x48] sm:$0xff]
        %v177 = vld [vmem:[%s1 + $0x50] sm:$0xff]
        %v178 = vld [vmem:[%s1 + $0x58] sm:$0xff]
        %v179 = vld [vmem:[%s1 + $0x60] sm:$0xff]
        %v180 = vld [vmem:[%s1 + $0x68] sm:$0xff]
        %v181 = vld [vmem:[%s1 + $0x70] sm:$0xff]
        %v182 = vld [vmem:[%s1 + $0x78] sm:$0xff]
        %v183 = vld [vmem:[%s2] sm:$0x1]
        %vm184 = vcmask 261120
        %v186 = vsel %vm184, %v166, 0
        %v189 = vsel %vm184, %v167, 0
        %v192 = vsel %vm184, %v168, 0
        %v195 = vsel %vm184, %v169, 0
        %v198 = vsel %vm184, %v170, 0
        %v201 = vsel %vm184, %v171, 0
        %v204 = vsel %vm184, %v172, 0
        %v207 = vsel %vm184, %v173, 0
        %v210 = vsel %vm184, %v174, 0
        %v213 = vsel %vm184, %v175, 0
        %v216 = vsel %vm184, %v176, 0
        %v219 = vsel %vm184, %v177, 0
        %v222 = vsel %vm184, %v178, 0
        %v225 = vsel %vm184, %v179, 0
        %v228 = vsel %vm184, %v180, 0
        %v231 = vsel %vm184, %v181, 0
        %v234 = vsel %vm184, %v182, 0
        %236 = vmatprep.subr.mxu0 0.0
        %237 = vmatpush1.xpose.msra.mxu0 %v189
        %238 = vmatprep.subr.mxu0 0.0
        %239 = vmatpush1.xpose.msra.mxu0 %v192
        %240 = vmatprep.subr.mxu0 0.0
        %241 = vmatpush1.xpose.msra.mxu0 %v195
        %242 = vmatprep.subr.mxu0 0.0
        %243 = vmatpush1.xpose.msra.mxu0 %v198
        %244 = vmatprep.subr.mxu0 0.0
        %245 = vmatpush1.xpose.msra.mxu0 %v201
        %246 = vmatprep.subr.mxu0 0.0
        %247 = vmatpush1.xpose.msra.mxu0 %v204
        %248 = vmatprep.subr.mxu0 0.0
        %249 = vmatpush1.xpose.msra.mxu0 %v207
        %250 = vmatprep.subr.mxu0 0.0
        %251 = vmatpush1.xpose.msra.mxu0 %v210
        %252 = vmatprep.subr.mxu0 0.0
        %253 = vmatpush1.xpose.msra.mxu0 %v213
        %254 = vmatprep.subr.mxu0 0.0
        %255 = vmatpush1.xpose.msra.mxu0 %v216
        %256 = vmatprep.subr.mxu0 0.0
        %257 = vmatpush1.xpose.msra.mxu0 %v219
        %258 = vmatprep.subr.mxu0 0.0
        %259 = vmatpush1.xpose.msra.mxu0 %v222
        %260 = vmatprep.subr.mxu0 0.0
        %261 = vmatpush1.xpose.msra.mxu0 %v225
        %262 = vmatprep.subr.mxu0 0.0
        %263 = vmatpush1.xpose.msra.mxu0 %v228
        %264 = vmatprep.subr.mxu0 0.0
        %265 = vmatpush1.xpose.msra.mxu0 %v231
        %266 = vmatprep.subr.mxu0 0.0
        %267 = vmatpush1.xpose.msra.mxu0 %v234
        %268 = vmatprep.subr.mxu0 0.0
        %269 = vmatpush1.xpose.msra.mxu0 0.0
        %270 = vmatprep.subr.mxu0 0.0
        %271 = vmatpush1.xpose.msra.mxu0 0.0
        %272 = vmatprep.subr.mxu0 0.0
        %273 = vmatpush1.xpose.msra.mxu0 0.0
        %274 = vmatprep.subr.mxu0 0.0
        %275 = vmatpush1.xpose.msra.mxu0 0.0
        %276 = vmatprep.subr.mxu0 0.0
        %277 = vmatpush1.xpose.msra.mxu0 0.0
        %278 = vmatprep.subr.mxu0 0.0
        %279 = vmatpush1.xpose.msra.mxu0 0.0
        %280 = vmatprep.subr.mxu0 0.0
        %281 = vmatpush1.xpose.msra.mxu0 0.0
        %282 = vmatprep.subr.mxu0 0.0
        %283 = vmatpush1.xpose.msra.mxu0 0.0
        %284 = vmatprep.subr.mxu0 0.0
        %285 = vmatpush1.xpose.msra.mxu0 0.0
        %286 = vmatprep.subr.mxu0 0.0
        %287 = vmatpush1.xpose.msra.mxu0 0.0
        %288 = vmatprep.subr.mxu0 0.0
        %289 = vmatpush1.xpose.msra.mxu0 0.0
        %290 = vmatprep.subr.mxu0 0.0
        %291 = vmatpush1.xpose.msra.mxu0 0.0
        %292 = vmatprep.subr.mxu0 0.0
        %293 = vmatpush1.xpose.msra.mxu0 0.0
        %294 = vmatprep.subr.mxu0 0.0
        %295 = vmatpush1.xpose.msra.mxu0 0.0
        %296 = vmatprep.subr.mxu0 0.0
        %297 = vmatpush1.xpose.msra.mxu0 0.0
        %298 = vmatprep.subr.mxu0 0.0
        %299 = vmatpush1.xpose.msra.mxu0 0.0
        %300 = vmatprep.mubr.f32.mxu0 0.0
        %301 = vmatmul.mubr.f32.gmra.mrb[0].mxu0 %v186
        %v302 = vpop.f32.mrb[0].mxu0
        %v303 = vadd.f32 0.0, %v302
        %v304 = vpop.f32.mrb[0].mxu0
        %305 = vdwg.mxu0
        %v306 = vmul.f32 %v166, %v166
        %v307 = vsel %vm184, %v306, 0.0
        %308 = vadd.xlane.f32.xlu0 %v307
        %v309 = vpop.xlane.xlu0 %308
        %v311 = vlaneseq
        %v312 = vshrl.u32 %v311, 7
        %v313 = vsub.s32 0, %v312
        %v314 = vrot.slane %v183, %v313
        %v316 = vadd.f32 %v309, %v314
        %v317 = vmul.f32 %v303, 2.0
        %v318 = vsub.f32 %v316, %v317
        %v319 = vmax.f32 %v318, 0.0
        %v320 = vmul.f32 %v319, 0.33333334
        %v321 = vadd.f32 %v320, 1.0
        %v322 = vrcp.pop %v321
        %v323 = vmul.f32 %v322, %v322
        %v324 = vlaneseq
        %v325 = vand.u32 %v324, 127
        %vm326 = vcmp.lt.s32.totalorder %v325, 16
        %v327 = vsel %vm326, %v323, 0.0
        %328 = vadd.xlane.f32.xlu0 %v327
        %v329 = vpop.xlane.xlu0 %328
        %v330 = vrcp.pop %v329
        %v331 = vmul.f32 %v327, %v330
        %332 = vst [vmem:[%s161] sm:$0xff] %v331
        %s333 = sand.u32 %s93, 1
        %s334 = scalar_lea.sflag [#allocation3], %s333
        %s335 = sand.u32 %s93, 1
        %s336 = smul.addr %s335, 8
        %s337 = scalar_lea.vmem [#allocation2], %s336
        // Predicated region
        $region33: #{tpu_custom_call.1} parent=31 // pred_check
          %p338 = pneg %p103
        $region34: #{tpu_custom_call.1} parent=31 // pred_check_branch
          %340 = sbr.rel (%p338) target = $region36
        $region35: #{tpu_custom_call.1} parent=31 // pred_region
          %s342 = ssub.s32 128, 128
          %343 = vsyncadd %s334, %s342
          %s344 = smul.addr %s17, 128
          %s345 = scalar_lea.hbm %s3, %s344
          %s347 = sshll.u32 %s337, 4
          %s348 = int_to_ptr.vmem [resolvable:$true] %s347
          %350 = dma.vmem_to_hbm [thread:$0]  %s348, 128, %s345, %s334
        $region36: #{tpu_custom_call.1} parent=31 // pred_fallthru
          _
      $region32: #{tpu_custom_call.1} parent=5 // pred_fallthru
        _
      %p351 = scmp.le.s32.totalorder 2, %s12
      // Predicated region
      $region37: #{tpu_custom_call.1} parent=5 // pred_check
        %p352 = pneg %p351
      $region38: #{tpu_custom_call.1} parent=5 // pred_check_branch
        %354 = sbr.rel (%p352) target = $region40
      $region39: #{tpu_custom_call.1} parent=5 // pred_region
        %s355 = ssub.s32 %s12, 2
        // Predicated region
        $region41: #{tpu_custom_call.1} parent=39 // pred_check
          %p356 = pneg %p109
        $region42: #{tpu_custom_call.1} parent=39 // pred_check_branch
          %358 = sbr.rel (%p356) target = $region44
        $region43: #{tpu_custom_call.1} parent=39 // pred_region
          %s359 = sand.u32 %s94, 1
          %s360 = scalar_lea.sflag [#allocation3], %s359
          %s361 = sand.u32 %s94, 1
          %s362 = smul.addr %s361, 8
          %s363 = scalar_lea.vmem [#allocation2], %s362
          %364 = dma.done %s360, 128
        $region44: #{tpu_custom_call.1} parent=39 // pred_fallthru
          _
      $region40: #{tpu_custom_call.1} parent=5 // pred_fallthru
        _
    $region6: #{tpu_custom_call.1} parent=1 // loop_footer
      %s16 = sadd.s32 1, %s12
    $region7: #{tpu_custom_call.1} parent=1 // loop_footer_branch
      %11 = sbr.rel target = $region3
    $region8: #{tpu_custom_call.1} parent=1 // loop_exit
      _
    %365 = vsyncpa [#allocation3], 1
    %s366 = scalar_lea.sflag [#allocation3], 1
    %367 = vsyncpa %s366, 1

</llo_original>
